<compile_context>
chip_gen: v7x
topology: tpu7x:2x2x1
jax: 0.10.0
libtpu: 0.0.40
codegen_flags: <defaults>
</compile_context>

<pallas_src>
import jax
import jax.numpy as jnp
from jax.experimental import pallas as pl
from jax.experimental.pallas import tpu as pltpu


def _dma_copy_kernel(x_ref, o_ref, sem):
    # Single whole-array HBM->HBM DMA. No VMEM staging, no vreg traffic.
    cp = pltpu.make_async_copy(x_ref, o_ref, sem)
    cp.start()
    cp.wait()


def albert_pooled_output(outputs):
    """JAX equivalent of AlbertPooledOutput.forward.

    Pure tuple indexing — no kernel, no copy. This is the recommended
    (fastest) path on every TPU generation.
    """
    return outputs[1]


def albert_pooled_output_copy(outputs, *, min_bytes_for_kernel=2 * 1024 * 1024):
    """Same semantics, but materializes outputs[1] into a fresh buffer via a
    single HBM->HBM DMA issued from a Pallas kernel.

    Below `min_bytes_for_kernel` the copy is cheaper than the custom-call
    launch overhead, so we skip the kernel and return outputs[1] directly.
    Pass min_bytes_for_kernel=0 to force the kernel path.
    """
    x = outputs[1]

    total_bytes = x.size * jnp.dtype(x.dtype).itemsize
    if total_bytes < min_bytes_for_kernel:
        # Launch overhead would dominate; the no-kernel path is strictly faster.
        return x

    return pl.pallas_call(
        _dma_copy_kernel,
        out_shape=jax.ShapeDtypeStruct(x.shape, x.dtype),
        in_specs=[pl.BlockSpec(memory_space=pl.ANY)],
        out_specs=pl.BlockSpec(memory_space=pl.ANY),
        scratch_shapes=[pltpu.SemaphoreType.DMA(())],
    )(x)


if __name__ == "__main__":
    key = jax.random.PRNGKey(0)
    k0, k1 = jax.random.split(key)

    # Small demo shapes consistent with the module's usage:
    # outputs = (sequence_output [B, S, H], pooled_output [B, H]).
    batch, seq, hidden = 2, 8, 32
    sequence_output = jax.random.normal(k0, (batch, seq, hidden), dtype=jnp.float32)
    pooled_output = jax.random.normal(k1, (batch, hidden), dtype=jnp.float32)
    outputs = (sequence_output, pooled_output)

    # Fast path: plain tuple indexing (the module's true semantics).
    selected = albert_pooled_output(outputs)
    jax.block_until_ready(selected)
    assert selected.shape == pooled_output.shape
    assert selected.dtype == pooled_output.dtype
    assert bool(jnp.array_equal(selected, pooled_output))

    # Pallas path: force the HBM->HBM DMA copy kernel to run once
    # (demo tensor is tiny, so override the small-size bypass).
    copied = albert_pooled_output_copy(outputs, min_bytes_for_kernel=0)
    jax.block_until_ready(copied)
    assert copied.shape == pooled_output.shape
    assert copied.dtype == pooled_output.dtype
    assert bool(jnp.array_equal(copied, pooled_output))

    # Bypass path: below the threshold, no kernel is launched.
    bypassed = albert_pooled_output_copy(outputs)
    jax.block_until_ready(bypassed)
    assert bool(jnp.array_equal(bypassed, pooled_output))

    print("KERNEL_OK")
</pallas_src>

<mosaic_0001>
module attributes {stable_mosaic.version = 11 : i64} {
  func.func @_dma_copy_kernel(%arg0: memref<2x32xf32, #tpu.memory_space<any>>, %arg1: memref<2x32xf32, #tpu.memory_space<any>>, %arg2: memref<!tpu.dma_semaphore, #tpu.memory_space<semaphore_mem>>) attributes {dimension_semantics = [], scalar_prefetch = 0 : i64, scratch_operands = 1 : i64, tpu.core_type = #tpu.core_type<tc>} {
    tpu.enqueue_dma source(%arg0 : memref<2x32xf32, #tpu.memory_space<any>>) target(%arg1 : memref<2x32xf32, #tpu.memory_space<any>>) target_semaphore(%arg2 : memref<!tpu.dma_semaphore, #tpu.memory_space<semaphore_mem>>)
    tpu.wait_dma2 semaphore(%arg2 : memref<!tpu.dma_semaphore, #tpu.memory_space<semaphore_mem>>) src(%arg0 : memref<2x32xf32, #tpu.memory_space<any>>) dst(%arg1 : memref<2x32xf32, #tpu.memory_space<any>>)
    return
  }
}

</mosaic_0001>

<llo_original>
// kernel: tpu_custom_call.1
$region0: #{tpu_custom_call.1}
  #allocation0 [shape = 'u32[]', space=smem, size = 0x4, offset = 0x4, fixed_abs, tag = 'smem constant byte address 0x4 - core index']
  #allocation1 [shape = 'u32[144,128]{1,0:T(1,128)}', space=vmem, size = 0x12000, scoped, tag = 'internal scratch']
  #allocation2 [shape = 's32[1]{0}', space=sflag, size = 0x4, scoped, tag = 'scratch operand']
  #allocation3 [shape = 's32[]', space=sflag, size = 0x4, offset = 0, fixed_abs, tag = 'sflag constant byte address 0x0 - dummy sync flag']
  #allocation4 [shape = 'u32[0]{0}', space=smem, size = 0, offset = 0, fixed_abs, tag = 'smem constant byte address 0x0 - null']
  %s0 = inlined_call_operand.hbm [shape: f32[2,32], index: 0, kind: input, shape index: {}]
  %s1 = inlined_call_operand.hbm [shape: f32[2,32], index: 1, kind: output, shape index: {}]
  %s2 = sld [smem:[#allocation0]]
  $region2: #{tpu_custom_call.1} parent=0
    _
  %s4 = ssub.s32 1, %s2
  %s5 = scalar_select 0, %s4, %s2
  %s7 = sshll.u32 1, 14
  %s8 = sxor.u32 4294967295, %s7
  %s11 = sshll.u32 3, 24
  %s12 = sxor.u32 4294967295, %s11
  %s13 = sand.u32 0, %s12
  %s15 = sor.u32 %s13, 0
  %18 = dma.general %s0, 32, %s1, [#allocation2], [#allocation3], [#allocation4], %s15, 0
  %s19 = smul.u32 2, 1
  %s20 = sshll.u32 %s19, 4
  %21 = dma.done [#allocation2], %s20
  %22 = vsyncmov [#allocation2]
  %s23 = vpop.sfrf %22
  %p24 = scmp.eq.s32.totalorder %s23, 0
  %p25 = pneg %p24
  %27 = shalt.err (%p25)

</llo_original>
